<compile_context>
chip_gen: v5e
topology: v5e:2x2
jax: 0.10.0
libtpu: 0.0.40
codegen_flags: <defaults>
</compile_context>

<pallas_src>
import functools

import jax
import jax.numpy as jnp
from jax.experimental import pallas as pl
from jax.experimental.pallas import tpu as pltpu


_VMEM_LIMIT = 48 << 20   # scoped-VMEM ceiling: fits v7x's 64 MiB/TC comfortably
_VMEM_BUDGET = 40 << 20  # planned usage: 4 streaming x/out buffers + mask buffers


def _round_up(x, m):
    return (x + m - 1) // m * m


def _sublane_rows(dtype):
    # Rows per vreg sublane tile: 8 for 4-byte, 16 for 2-byte, 32 for 1-byte.
    return max(8, 32 // jnp.dtype(dtype).itemsize)


def _locked_dropout_kernel(x_ref, m_ref, o_ref):
    # x_ref: (t_tile, bh_tile) tile; m_ref: (1, bh_tile) pre-scaled f32 keep-mask.
    # One broadcast multiply per vreg; product computed in f32, cast on store.
    o_ref[...] = (x_ref[...] * m_ref[...]).astype(o_ref.dtype)


def locked_dropout(x, dropout_rate, key, *, training=True, donate_input=False):
    """LockedDropout forward. x: (T, B, H)."""
    if not training or not dropout_rate:
        return x

    t, b, h = x.shape
    bh = b * h
    keep_prob = 1.0 - float(dropout_rate)
    itemsize = jnp.dtype(x.dtype).itemsize
    sub = _sublane_rows(x.dtype)

    # Single (1, B*H) keep-mask, sampled once and reused ("locked") across T.
    keep = jax.random.bernoulli(key, p=keep_prob, shape=(1, bh))
    mask = keep.astype(jnp.float32) * jnp.float32(1.0 / keep_prob)

    x2 = x.reshape(t, bh)            # free metadata reshape -- no pad, no copy
    row_bytes = bh * itemsize

    # A (1, bh) f32 mask block occupies 8 sublanes x bh lanes of VMEM; budget
    # for it double-buffered and give the rest to the 4 streaming x/out bufs.
    # TODO(synk): single-buffer the mask via pipeline_mode=pl.Buffered(1) once
    # that knob is verified on this JAX build; the budget below conservatively
    # assumes the default double buffering instead.
    mask_vmem = 2 * 8 * 4 * bh
    per_buf = max((_VMEM_BUDGET - mask_vmem) // 4, 0)

    if sub * row_bytes <= per_buf:
        # 1-D grid over T; full B*H as the lane dim ("full dim" satisfies the
        # (8,128) rule with no HBM padding). ~8-10 MiB tiles.
        t_tile = max(sub, (per_buf // row_bytes) // sub * sub)
        t_tile = min(t_tile, _round_up(t, sub))
        if t_tile >= t and t > sub:
            # v7x megacore: keep >= 2 grid steps so both TensorCores get work.
            t_tile = _round_up(pl.cdiv(t, 2), sub)
        t_tile = min(t_tile, t)
        grid = (pl.cdiv(t, t_tile),)
        x_spec = pl.BlockSpec((t_tile, bh), lambda i: (i, 0))
        o_spec = pl.BlockSpec((t_tile, bh), lambda i: (i, 0))
        m_spec = pl.BlockSpec((1, bh), lambda i: (0, 0))
        semantics = ("parallel",)
    else:
        # Very large B*H: tile the lane axis too (128-aligned) so every VMEM
        # buffer stays bounded on every generation (tightest on v7x's 64 MiB).
        t_tile = sub
        denom = 4 * sub * itemsize + 2 * 8 * 4
        bh_tile = max(128, (_VMEM_BUDGET // denom) // 128 * 128)
        bh_tile = min(bh_tile, _round_up(bh, 128))
        grid = (pl.cdiv(t, t_tile), pl.cdiv(bh, bh_tile))
        x_spec = pl.BlockSpec((t_tile, bh_tile), lambda i, j: (i, j))
        o_spec = pl.BlockSpec((t_tile, bh_tile), lambda i, j: (i, j))
        m_spec = pl.BlockSpec((1, bh_tile), lambda i, j: (0, j))
        semantics = ("parallel", "parallel")

    out2 = pl.pallas_call(
        _locked_dropout_kernel,
        out_shape=jax.ShapeDtypeStruct((t, bh), x.dtype),
        grid=grid,
        in_specs=[x_spec, m_spec],
        out_specs=o_spec,
        compiler_params=pltpu.CompilerParams(
            dimension_semantics=semantics,
            vmem_limit_bytes=_VMEM_LIMIT,
        ),
        cost_estimate=pl.CostEstimate(
            flops=t * bh,
            bytes_accessed=2 * t * bh * itemsize + 4 * bh,
            transcendentals=0,
        ),
        # Alias the output onto x when the caller donates it: bandwidth is
        # unchanged (1 read + 1 write) but peak HBM footprint halves.
        input_output_aliases=({0: 0} if donate_input else {}),
    )(x2, mask)

    return out2.reshape(t, b, h)


if __name__ == "__main__":
    root = jax.random.PRNGKey(0)
    x_key, mask_key, xr_key = jax.random.split(root, 3)

    # Primary shape implied by the module: (seq=8, batch=2, hidden=32).
    T, B, H = 8, 2, 32
    dropout_rate = 0.3
    keep_prob = 1.0 - dropout_rate
    x = jax.random.normal(x_key, (T, B, H), dtype=jnp.float32)

    out = jax.block_until_ready(locked_dropout(x, dropout_rate, mask_key))
    assert out.shape == x.shape and out.dtype == x.dtype

    # Reference: same mask draw as the wrapper, broadcast over T.
    keep = jax.random.bernoulli(mask_key, p=keep_prob, shape=(1, B * H))
    scale = (keep.astype(jnp.float32) * jnp.float32(1.0 / keep_prob)).reshape(1, B, H)
    expected = x * scale
    assert bool(jnp.allclose(out, expected, atol=1e-6, rtol=1e-6))

    # Mask is "locked" across time: out[i] * x[0] == out[0] * x[i] elementwise
    # (cross-multiplication avoids dividing by near-zero activations).
    assert bool(jnp.allclose(out * x[0:1], out[0:1] * x, atol=1e-5, rtol=1e-5))

    # Ragged shape (T not a multiple of 8, B*H not a multiple of 128): Pallas
    # clips the edge blocks -- no wrapper-side padding or output slicing.
    Tr, Br, Hr = 13, 3, 20
    xr = jax.random.normal(xr_key, (Tr, Br, Hr), dtype=jnp.float32)
    outr = jax.block_until_ready(locked_dropout(xr, dropout_rate, mask_key))
    keepr = jax.random.bernoulli(mask_key, p=keep_prob, shape=(1, Br * Hr))
    scaler = (keepr.astype(jnp.float32) * jnp.float32(1.0 / keep_prob)).reshape(1, Br, Hr)
    assert bool(jnp.allclose(outr, xr * scaler, atol=1e-6, rtol=1e-6))

    # bf16 path: 16-row sublane packing; product computed in f32, cast once.
    xb = x.astype(jnp.bfloat16)
    outb = jax.block_until_ready(locked_dropout(xb, dropout_rate, mask_key))
    expb = (xb.astype(jnp.float32) * scale).astype(jnp.bfloat16)
    assert outb.dtype == jnp.bfloat16
    assert bool(
        jnp.allclose(outb.astype(jnp.float32), expb.astype(jnp.float32),
                     atol=1e-2, rtol=1e-2)
    )

    # Donation path: output aliased onto x (halves peak HBM footprint).
    donated = jax.jit(
        functools.partial(
            locked_dropout, dropout_rate=dropout_rate, key=mask_key,
            donate_input=True,
        ),
        donate_argnums=0,
    )
    x_don = x + 0.0                       # fresh buffer we can safely donate
    out_alias = jax.block_until_ready(donated(x_don))
    assert bool(jnp.allclose(out_alias, expected, atol=1e-6, rtol=1e-6))

    # Eval / zero-rate path returns the input unchanged.
    out_eval = jax.block_until_ready(
        locked_dropout(x, dropout_rate, mask_key, training=False)
    )
    assert bool(jnp.all(out_eval == x))
    out_zero = jax.block_until_ready(locked_dropout(x, 0.0, mask_key))
    assert bool(jnp.all(out_zero == x))

    print("KERNEL_OK")
</pallas_src>

<mosaic_0001>
module attributes {stable_mosaic.version = 11 : i64} {
  func.func @_locked_dropout_kernel(%arg0: i32, %arg1: memref<8x64xf32, #tpu.memory_space<vmem>>, %arg2: memref<1x64xf32, #tpu.memory_space<vmem>>, %arg3: memref<8x64xf32, #tpu.memory_space<vmem>>) attributes {dimension_semantics = [#tpu.dimension_semantics<parallel>], iteration_bounds = array<i64: 1>, scalar_prefetch = 0 : i64, scratch_operands = 0 : i64, tpu.core_type = #tpu.core_type<tc>, window_params = [{transform_indices = @transform_0, window_bounds = array<i64: 8, 64>}, {pipeline_mode = #tpu.pipeline_mode<synchronous>, transform_indices = @transform_1, window_bounds = array<i64: 1, 64>}, {transform_indices = @transform_2, window_bounds = array<i64: 8, 64>}]} {
    %c0 = arith.constant 0 : index
    %c0_0 = arith.constant 0 : index
    %0 = vector.load %arg1[%c0, %c0_0] : memref<8x64xf32, #tpu.memory_space<vmem>>, vector<8x64xf32>
    %c0_1 = arith.constant 0 : index
    %c0_2 = arith.constant 0 : index
    %1 = vector.load %arg2[%c0_1, %c0_2] : memref<1x64xf32, #tpu.memory_space<vmem>>, vector<1x64xf32>
    %2 = vector.broadcast %1 : vector<1x64xf32> to vector<8x64xf32>
    %3 = arith.mulf %0, %2 : vector<8x64xf32>
    %c0_3 = arith.constant 0 : index
    %c0_4 = arith.constant 0 : index
    %4 = vector.load %arg3[%c0_3, %c0_4] : memref<8x64xf32, #tpu.memory_space<vmem>>, vector<8x64xf32>
    tpu.vector_store %arg3[%c0_3, %c0_4], %3 {strides = array<i32>} : memref<8x64xf32, #tpu.memory_space<vmem>>, vector<8x64xf32>,
    return
  }
  func.func @transform_0(%arg0: i32) -> (i32, i32) {
    %c0_i32 = arith.constant 0 : i32
    %c0_i32_0 = arith.constant 0 : i32
    return %arg0, %c0_i32 : i32, i32
  }
  func.func @transform_1(%arg0: i32) -> (i32, i32) {
    %c0_i32 = arith.constant 0 : i32
    %c0_i32_0 = arith.constant 0 : i32
    %c0_i32_1 = arith.constant 0 : i32
    return %c0_i32, %c0_i32_0 : i32, i32
  }
  func.func @transform_2(%arg0: i32) -> (i32, i32) {
    %c0_i32 = arith.constant 0 : i32
    %c0_i32_0 = arith.constant 0 : i32
    return %arg0, %c0_i32 : i32, i32
  }
}

</mosaic_0001>

<llo_original>
// kernel: tpu_custom_call.1
$region0: #{tpu_custom_call.1}
  #allocation0 [shape = 'u32[]', space=smem, size = 0x4, offset = 0x4, fixed_abs, tag = 'smem constant byte address 0x4 - core index']
  #allocation1 [shape = 'u32[72,128]{1,0:T(1,128)}', space=vmem, size = 0x9000, scoped, tag = 'internal scratch']
  %s0 = inlined_call_operand.hbm [shape: f32[8,64], index: 0, kind: input, shape index: {}]
  %s1 = inlined_call_operand.hbm [shape: f32[1,64], index: 1, kind: input, shape index: {}]
  %s2 = inlined_call_operand.hbm [shape: f32[8,64], index: 2, kind: output, shape index: {}]
  %s3 = sld [smem:[#allocation0]]
  $region26: #{tpu_custom_call.1} parent=0
    _
  %s5 = ssub.s32 1, %s3
  %s6 = scalar_select 0, %s5, %s3
  $region1: #{tpu_custom_call.1} parent=0
    #allocation2 [shape = 'u8[4096]{0}', space=vmem, size = 0x1000, scoped, tag = 'input window, operand 0, single buffered']
    #allocation3 [shape = 's32[1]{0}', space=sflag, size = 0x4, scoped, tag = 'scoped memory for tpu_custom_call.1']
    #allocation4 [shape = 's32[1]{0}', space=sflag, size = 0x4, scoped, tag = 'scoped memory for tpu_custom_call.1']
    #allocation5 [shape = 'u8[512]{0}', space=vmem, size = 0x400, scoped, tag = 'input window, operand 1, single buffered']
    #allocation6 [shape = 's32[1]{0}', space=sflag, size = 0x4, scoped, tag = 'scoped memory for tpu_custom_call.1']
    #allocation7 [shape = 'u8[4096]{0}', space=vmem, size = 0x1000, scoped, tag = 'output window, operand 0, single buffered']
    %7 = vsyncpa [#allocation3], 0
    %8 = vsyncpa [#allocation6], 0
    %9 = vsyncpa [#allocation4], 0
    // Predicated region
    $region2: #{tpu_custom_call.1} parent=1 // pred_check
      _
    $region3: #{tpu_custom_call.1} parent=1 // pred_check_branch
      %11 = sbr.rel (0) target = $region5
    $region4: #{tpu_custom_call.1} parent=1 // pred_region
      %13 = vsyncadd [#allocation3], 0
      %s15 = sshll.u32 %s0, 4
      %s16 = int_to_ptr.hbm [resolvable:$true] %s15
      %s17 = sshll.u32 [#allocation2], 4
      %s18 = int_to_ptr.vmem [resolvable:$true] %s17
      %20 = dma.hbm_to_vmem [thread:$0]  %s16, 128, %s18, [#allocation3]
    $region5: #{tpu_custom_call.1} parent=1 // pred_fallthru
      _
    // Predicated region
    $region6: #{tpu_custom_call.1} parent=1 // pred_check
      _
    $region7: #{tpu_custom_call.1} parent=1 // pred_check_branch
      %22 = sbr.rel (0) target = $region9
    $region8: #{tpu_custom_call.1} parent=1 // pred_region
      %24 = vsyncadd [#allocation6], 0
      %s26 = sshll.u32 %s1, 4
      %s27 = int_to_ptr.hbm [resolvable:$true] %s26
      %s28 = sshll.u32 [#allocation5], 4
      %s29 = int_to_ptr.vmem [resolvable:$true] %s28
      %31 = dma.hbm_to_vmem [thread:$0]  %s27, 16, %s29, [#allocation6]
    $region9: #{tpu_custom_call.1} parent=1 // pred_fallthru
      _
    // Predicated region
    $region10: #{tpu_custom_call.1} parent=1 // pred_check
      _
    $region11: #{tpu_custom_call.1} parent=1 // pred_check_branch
      %33 = sbr.rel (0) target = $region13
    $region12: #{tpu_custom_call.1} parent=1 // pred_region
      %35 = dma.done [#allocation3], 128
    $region13: #{tpu_custom_call.1} parent=1 // pred_fallthru
      _
    // Predicated region
    $region14: #{tpu_custom_call.1} parent=1 // pred_check
      _
    $region15: #{tpu_custom_call.1} parent=1 // pred_check_branch
      %37 = sbr.rel (0) target = $region17
    $region16: #{tpu_custom_call.1} parent=1 // pred_region
      %39 = dma.done [#allocation6], 16
    $region17: #{tpu_custom_call.1} parent=1 // pred_fallthru
      _
    %v40 = vld [vmem:[#allocation2] sm:$0xff]
    %v41 = vld [vmem:[#allocation5] sm:$0x1]
    %v43 = vperm.slane %v41, 0
    %v45 = vmul.f32 %v40, %v43
    %vm46 = vcmask 523264
    %47 = vst.msk [vmem:[#allocation7] sm:$0xff] %vm46, %v45
    // Predicated region
    $region18: #{tpu_custom_call.1} parent=1 // pred_check
      _
    $region19: #{tpu_custom_call.1} parent=1 // pred_check_branch
      %49 = sbr.rel (0) target = $region21
    $region20: #{tpu_custom_call.1} parent=1 // pred_region
      %51 = vsyncadd [#allocation4], 0
      %s53 = sshll.u32 [#allocation7], 4
      %s54 = int_to_ptr.vmem [resolvable:$true] %s53
      %s55 = sshll.u32 %s2, 4
      %s56 = int_to_ptr.hbm [resolvable:$true] %s55
      %58 = dma.vmem_to_hbm [thread:$0]  %s54, 128, %s56, [#allocation4]
    $region21: #{tpu_custom_call.1} parent=1 // pred_fallthru
      _
    // Predicated region
    $region22: #{tpu_custom_call.1} parent=1 // pred_check
      _
    $region23: #{tpu_custom_call.1} parent=1 // pred_check_branch
      %60 = sbr.rel (0) target = $region25
    $region24: #{tpu_custom_call.1} parent=1 // pred_region
      %62 = dma.done [#allocation4], 128
    $region25: #{tpu_custom_call.1} parent=1 // pred_fallthru
      _
    %63 = vsyncpa [#allocation3], 1
    %64 = vsyncpa [#allocation6], 1
    %65 = vsyncpa [#allocation4], 1

</llo_original>
